<compile_context>
chip_gen: v7x
topology: tpu7x:2x2x1
jax: 0.10.0
libtpu: 0.0.40
codegen_flags: <defaults>
</compile_context>

<pallas_src>
import functools

import jax
import jax.numpy as jnp
from jax import lax
from jax.experimental import pallas as pl
from jax.experimental.pallas import tpu as pltpu

_COS_EPS = 1e-8          # torch.nn.CosineSimilarity default eps
_OUT_BLOCK = (8, 128)    # lane-dense per-row-tile output block (one f32 tile)


def _nt_xent_pos_kernel(zi_ref, zj_ref, out_ref, dot_ref, sii_ref, sjj_ref, *,
                        batch_size, feat, tile_rows, tile_feat, out_scale):
    i = pl.program_id(0)                 # row-tile index      ("parallel")
    k = pl.program_id(1)                 # feature-tile index  ("arbitrary")
    nk = pl.num_programs(1)

    @pl.when(k == 0)
    def _init():
        dot_ref[...] = jnp.zeros_like(dot_ref)
        sii_ref[...] = jnp.zeros_like(sii_ref)
        sjj_ref[...] = jnp.zeros_like(sjj_ref)

    # Keep the f32 up-cast so results stay bit-comparable to the f32 reference
    # on every generation (v5e has no bf16 VPU anyway).
    # TODO(synk): optional bf16-product path for v6e/v7x (halves temps, changes numerics).
    zi = zi_ref[...].astype(jnp.float32)       # (TM, TF)
    zj = zj_ref[...].astype(jnp.float32)       # (TM, TF)

    pij = zi * zj
    pii = zi * zi
    pjj = zj * zj

    # Feature-tail mask: only traced when C % TF != 0 (the last feature block
    # reads past the array edge).  Post-compute select -> padded garbage
    # (possibly NaN/Inf) is discarded, never fed into arithmetic results.
    if feat % tile_feat != 0:
        col = (lax.broadcasted_iota(jnp.int32, (tile_rows, tile_feat), 1)
               + k * tile_feat)
        valid = col < feat
        pij = jnp.where(valid, pij, 0.0)
        pii = jnp.where(valid, pii, 0.0)
        pjj = jnp.where(valid, pjj, 0.0)

    dot_ref[...] += jnp.sum(pij, axis=-1, keepdims=True)
    sii_ref[...] += jnp.sum(pii, axis=-1, keepdims=True)
    sjj_ref[...] += jnp.sum(pjj, axis=-1, keepdims=True)

    @pl.when(k == nk - 1)
    def _finalize():
        # torch: cos = dot / max(||zi||*||zj||, eps)
        #            = dot * rsqrt(max(sii*sjj, eps^2))   (EUP rsqrt, no divide)
        inv = lax.rsqrt(jnp.maximum(sii_ref[...] * sjj_ref[...],
                                    jnp.float32(_COS_EPS * _COS_EPS)))
        cos = dot_ref[...] * inv
        cos2 = cos * cos                                   # (TM, 1)

        # Row-tail mask: only traced when B % TM != 0.  Keep it a select so
        # NaN/Inf from padded rows are dropped, not multiplied.
        if batch_size % tile_rows != 0:
            row = (lax.broadcasted_iota(jnp.int32, (tile_rows, 1), 0)
                   + i * tile_rows)
            cos2 = jnp.where(row < batch_size, cos2, 0.0)

        # Full loss scale folded in; the wrapper is one dense jnp.sum.
        partial = jnp.sum(cos2) * jnp.float32(out_scale)
        out_ref[...] = jnp.broadcast_to(partial, _OUT_BLOCK)


def _round_down(x, m):
    return (x // m) * m


def _round_up(x, m):
    return ((x + m - 1) // m) * m


def _vmem_budget():
    """(buffer budget, vmem_limit_bytes) sized per TPU generation."""
    cap = 0
    try:
        cap = int(getattr(pltpu.get_tpu_info(), "vmem_capacity_bytes", 0))
    except Exception:
        cap = 0
    if cap >= 96 * 1024 * 1024:                 # v5e / v6e: 128 MiB physical VMEM
        return 48 * 1024 * 1024, 96 * 1024 * 1024
    # v7x (64 MiB physical) or unknown: stay conservative.
    return 24 * 1024 * 1024, 32 * 1024 * 1024


def _choose_tiles(batch, feat, itemsize, sublane, budget):
    """Pick (tile_rows, tile_feat) so pipeline buffers + in-kernel temps fit."""
    temp_f32 = 3 + (2 if itemsize < 4 else 0)   # 3 products (+2 casts if sub-f32)

    def per_row_bytes(tf):
        # 2 inputs x 2 pipeline buffers (input dtype) + f32 temporaries
        # + three (TM, 1) f32 accumulators (lane-padded to 128).
        return 4 * tf * itemsize + temp_f32 * tf * 4 + 3 * 128 * 4

    batch_rows = _round_up(batch, sublane)

    # Prefer a single feature tile; only tile C when a full-width row would
    # squeeze the row tile below ~8 sublane groups.
    tile_feat = feat
    min_rows = min(batch_rows, 8 * sublane)
    if feat > 128 and budget // per_row_bytes(feat) < min_rows:
        tf_cap = (budget // min_rows - 3 * 128 * 4) // (4 * itemsize + temp_f32 * 4)
        tile_feat = max(128, _round_down(min(tf_cap, feat), 128))

    tile_rows = min(_round_down(budget // per_row_bytes(tile_feat), sublane),
                    batch_rows)
    tile_rows = max(tile_rows, sublane)

    # Parallelism: >= 2 row tiles (ideally 4) so both v7x TensorCores get work
    # and double-buffering has steps to overlap -- but never split an input
    # block below ~1.5 MiB unless that is what it takes to reach 2 tiles.
    if batch_rows >= 2 * sublane:
        rows_1p5mib = _round_up(pl.cdiv(3 << 19, tile_feat * itemsize), sublane)
        tm_two = max(sublane, _round_down(batch_rows // 2, sublane))
        tm_four = (max(sublane, _round_down(batch_rows // 4, sublane))
                   if batch_rows >= 4 * sublane else tm_two)
        tm_par = max(tm_four, min(rows_1p5mib, tm_two))
        tile_rows = min(tile_rows, max(tm_par, sublane))

    return tile_rows, tile_feat


def nt_xent_pos(z_i, z_j, temperature, *, tile_rows=None, tile_feat=None):
    """Pallas implementation of NT_Xent_pos.forward (no projection head)."""
    assert z_i.shape == z_j.shape and z_i.ndim == 2
    batch, feat = z_i.shape
    itemsize = jnp.dtype(z_i.dtype).itemsize
    sublane = max(8, 32 // itemsize)        # 8 f32 / 16 bf16 / 32 int8|fp8

    budget, vmem_limit = _vmem_budget()
    auto_tm, auto_tf = _choose_tiles(batch, feat, itemsize, sublane, budget)

    if tile_rows is None:
        tm = auto_tm
    else:
        tm = max(sublane,
                 _round_down(min(int(tile_rows), _round_up(batch, sublane)), sublane))
    if tile_feat is None:
        tf = auto_tf
    else:
        tf = int(tile_feat)
        tf = feat if (tf >= feat or feat <= 128) else max(128, _round_down(tf, 128))

    num_row_tiles = pl.cdiv(batch, tm)
    num_feat_tiles = pl.cdiv(feat, tf)

    # positive_samples stacks the +B and -B diagonals (identical values):
    #   loss = 2 * sum(cos^2) / (T^2 * N^2),  N = 2B.
    # Each per-tile partial is replicated over the 8x128 output block, so the
    # replication factor is folded in here as well.
    n = 2 * batch
    out_scale = 2.0 / (float(temperature) ** 2 * float(n) ** 2
                       * float(_OUT_BLOCK[0] * _OUT_BLOCK[1]))

    kernel = functools.partial(
        _nt_xent_pos_kernel,
        batch_size=batch, feat=feat, tile_rows=tm, tile_feat=tf,
        out_scale=out_scale)

    cost = pl.CostEstimate(
        flops=6 * batch * feat + 8 * batch,     # products + sums + finalize
        transcendentals=batch,                  # one rsqrt per row
        bytes_accessed=2 * batch * feat * itemsize
        + num_row_tiles * _OUT_BLOCK[0] * _OUT_BLOCK[1] * 4,
    )

    partials = pl.pallas_call(
        kernel,
        out_shape=jax.ShapeDtypeStruct(
            (num_row_tiles * _OUT_BLOCK[0], _OUT_BLOCK[1]), jnp.float32),
        grid=(num_row_tiles, num_feat_tiles),
        in_specs=[
            pl.BlockSpec((tm, tf), lambda i, k: (i, k)),
            pl.BlockSpec((tm, tf), lambda i, k: (i, k)),
        ],
        out_specs=pl.BlockSpec(_OUT_BLOCK, lambda i, k: (i, 0)),
        scratch_shapes=[
            pltpu.VMEM((tm, 1), jnp.float32),   # sum(zi * zj) per row
            pltpu.VMEM((tm, 1), jnp.float32),   # sum(zi * zi) per row
            pltpu.VMEM((tm, 1), jnp.float32),   # sum(zj * zj) per row
        ],
        compiler_params=pltpu.CompilerParams(
            dimension_semantics=("parallel", "arbitrary"),
            vmem_limit_bytes=vmem_limit,
        ),
        cost_estimate=cost,
    )(z_i, z_j)

    # Every element of every (8,128) block already carries its tile's scaled
    # partial, so the wrapper is a single dense reduction (no strided gather).
    return jnp.sum(partials)


def _reference(z_i, z_j, temperature):
    # Pure-JAX reference mirroring the PyTorch module literally.
    b = z_i.shape[0]
    n = 2 * b
    z = jnp.concatenate([z_i, z_j], axis=0).astype(jnp.float32)
    num = jnp.sum(z[:, None, :] * z[None, :, :], axis=2)
    nz = jnp.linalg.norm(z, axis=1)
    sim = num / jnp.maximum(nz[:, None] * nz[None, :], _COS_EPS) / temperature
    sim_i_j = jnp.diagonal(sim, offset=b)
    sim_j_i = jnp.diagonal(sim, offset=-b)
    pos = jnp.concatenate([sim_i_j, sim_j_i]).reshape(n, 1)
    loss = jnp.mean(pos ** 2)  # MSE against zeros
    return loss / n


if __name__ == "__main__":
    temperature = 0.5
    key = jax.random.PRNGKey(0)
    k1, k2, k3, k4, k5, k6 = jax.random.split(key, 6)

    # 1) Small single-tile shape consistent with the module (batch x hidden).
    z_i = jax.random.normal(k1, (8, 32), dtype=jnp.float32)
    z_j = jax.random.normal(k2, (8, 32), dtype=jnp.float32)
    loss = nt_xent_pos(z_i, z_j, temperature)
    jax.block_until_ready(loss)
    ref = _reference(z_i, z_j, temperature)
    assert jnp.allclose(loss, ref, rtol=2e-5, atol=1e-6), (loss, ref)

    # 2) Multi row-tile + row-tail masking path (forced small tile).
    z_i2 = jax.random.normal(k3, (50, 64), dtype=jnp.float32)
    z_j2 = jax.random.normal(k4, (50, 64), dtype=jnp.float32)
    loss2 = nt_xent_pos(z_i2, z_j2, temperature, tile_rows=16)
    jax.block_until_ready(loss2)
    ref2 = _reference(z_i2, z_j2, temperature)
    assert jnp.allclose(loss2, ref2, rtol=2e-5, atol=1e-6), (loss2, ref2)

    # 3) Feature-tiled ("arbitrary") reduction axis + feature-tail masking.
    z_i3 = jax.random.normal(k5, (20, 160), dtype=jnp.float32)
    z_j3 = jax.random.normal(k6, (20, 160), dtype=jnp.float32)
    loss3 = nt_xent_pos(z_i3, z_j3, temperature, tile_rows=8, tile_feat=128)
    jax.block_until_ready(loss3)
    ref3 = _reference(z_i3, z_j3, temperature)
    assert jnp.allclose(loss3, ref3, rtol=2e-5, atol=1e-6), (loss3, ref3)

    print("KERNEL_OK")
</pallas_src>

<mosaic_0001>
module attributes {stable_mosaic.version = 11 : i64} {
  func.func @_nt_xent_pos_kernel(%arg0: i32, %arg1: i32, %arg2: memref<8x32xf32, #tpu.memory_space<vmem>>, %arg3: memref<8x32xf32, #tpu.memory_space<vmem>>, %arg4: memref<8x128xf32, #tpu.memory_space<vmem>>, %arg5: memref<8x1xf32, #tpu.memory_space<vmem>>, %arg6: memref<8x1xf32, #tpu.memory_space<vmem>>, %arg7: memref<8x1xf32, #tpu.memory_space<vmem>>) attributes {dimension_semantics = [#tpu.dimension_semantics<parallel>, #tpu.dimension_semantics<arbitrary>], iteration_bounds = array<i64: 1, 1>, scalar_prefetch = 0 : i64, scratch_operands = 3 : i64, tpu.core_type = #tpu.core_type<tc>, window_params = [{transform_indices = @transform_0, window_bounds = array<i64: 8, 32>}, {transform_indices = @transform_1, window_bounds = array<i64: 8, 32>}, {transform_indices = @transform_2, window_bounds = array<i64: 8, 128>}]} {
    %c0_i32 = arith.constant 0 : i32
    %0 = arith.cmpi eq, %arg1, %c0_i32 : i32
    %1 = arith.extui %0 : i1 to i32
    %c0_i32_0 = arith.constant 0 : i32
    %2 = arith.cmpi ne, %1, %c0_i32_0 : i32
    scf.if %2 {
      %cst_20 = arith.constant 0.000000e+00 : f32
      %26 = vector.broadcast %cst_20 : f32 to vector<8x1xf32>
      %c0_21 = arith.constant 0 : index
      %c0_22 = arith.constant 0 : index
      %27 = vector.load %arg5[%c0_21, %c0_22] : memref<8x1xf32, #tpu.memory_space<vmem>>, vector<8x1xf32>
      tpu.vector_store %arg5[%c0_21, %c0_22], %26 {strides = array<i32>} : memref<8x1xf32, #tpu.memory_space<vmem>>, vector<8x1xf32>,
      %cst_23 = arith.constant 0.000000e+00 : f32
      %28 = vector.broadcast %cst_23 : f32 to vector<8x1xf32>
      %c0_24 = arith.constant 0 : index
      %c0_25 = arith.constant 0 : index
      %29 = vector.load %arg6[%c0_24, %c0_25] : memref<8x1xf32, #tpu.memory_space<vmem>>, vector<8x1xf32>
      tpu.vector_store %arg6[%c0_24, %c0_25], %28 {strides = array<i32>} : memref<8x1xf32, #tpu.memory_space<vmem>>, vector<8x1xf32>,
      %cst_26 = arith.constant 0.000000e+00 : f32
      %30 = vector.broadcast %cst_26 : f32 to vector<8x1xf32>
      %c0_27 = arith.constant 0 : index
      %c0_28 = arith.constant 0 : index
      %31 = vector.load %arg7[%c0_27, %c0_28] : memref<8x1xf32, #tpu.memory_space<vmem>>, vector<8x1xf32>
      tpu.vector_store %arg7[%c0_27, %c0_28], %30 {strides = array<i32>} : memref<8x1xf32, #tpu.memory_space<vmem>>, vector<8x1xf32>,
    } else {
    }
    %c0 = arith.constant 0 : index
    %c0_1 = arith.constant 0 : index
    %3 = vector.load %arg2[%c0, %c0_1] : memref<8x32xf32, #tpu.memory_space<vmem>>, vector<8x32xf32>
    %c0_2 = arith.constant 0 : index
    %c0_3 = arith.constant 0 : index
    %4 = vector.load %arg3[%c0_2, %c0_3] : memref<8x32xf32, #tpu.memory_space<vmem>>, vector<8x32xf32>
    %5 = arith.mulf %3, %4 : vector<8x32xf32>
    %6 = arith.mulf %3, %3 : vector<8x32xf32>
    %7 = arith.mulf %4, %4 : vector<8x32xf32>
    %c0_4 = arith.constant 0 : index
    %c0_5 = arith.constant 0 : index
    %8 = vector.load %arg5[%c0_4, %c0_5] : memref<8x1xf32, #tpu.memory_space<vmem>>, vector<8x1xf32>
    %cst = arith.constant dense<0.000000e+00> : vector<8xf32>
    %9 = vector.multi_reduction <add>, %5, %cst [1] : vector<8x32xf32> to vector<8xf32>
    %10 = vector.shape_cast %9 : vector<8xf32> to vector<8x1xf32>
    %11 = arith.addf %8, %10 : vector<8x1xf32>
    %c0_6 = arith.constant 0 : index
    %c0_7 = arith.constant 0 : index
    %12 = vector.load %arg5[%c0_6, %c0_7] : memref<8x1xf32, #tpu.memory_space<vmem>>, vector<8x1xf32>
    tpu.vector_store %arg5[%c0_6, %c0_7], %11 {strides = array<i32>} : memref<8x1xf32, #tpu.memory_space<vmem>>, vector<8x1xf32>,
    %c0_8 = arith.constant 0 : index
    %c0_9 = arith.constant 0 : index
    %13 = vector.load %arg6[%c0_8, %c0_9] : memref<8x1xf32, #tpu.memory_space<vmem>>, vector<8x1xf32>
    %cst_10 = arith.constant dense<0.000000e+00> : vector<8xf32>
    %14 = vector.multi_reduction <add>, %6, %cst_10 [1] : vector<8x32xf32> to vector<8xf32>
    %15 = vector.shape_cast %14 : vector<8xf32> to vector<8x1xf32>
    %16 = arith.addf %13, %15 : vector<8x1xf32>
    %c0_11 = arith.constant 0 : index
    %c0_12 = arith.constant 0 : index
    %17 = vector.load %arg6[%c0_11, %c0_12] : memref<8x1xf32, #tpu.memory_space<vmem>>, vector<8x1xf32>
    tpu.vector_store %arg6[%c0_11, %c0_12], %16 {strides = array<i32>} : memref<8x1xf32, #tpu.memory_space<vmem>>, vector<8x1xf32>,
    %c0_13 = arith.constant 0 : index
    %c0_14 = arith.constant 0 : index
    %18 = vector.load %arg7[%c0_13, %c0_14] : memref<8x1xf32, #tpu.memory_space<vmem>>, vector<8x1xf32>
    %cst_15 = arith.constant dense<0.000000e+00> : vector<8xf32>
    %19 = vector.multi_reduction <add>, %7, %cst_15 [1] : vector<8x32xf32> to vector<8xf32>
    %20 = vector.shape_cast %19 : vector<8xf32> to vector<8x1xf32>
    %21 = arith.addf %18, %20 : vector<8x1xf32>
    %c0_16 = arith.constant 0 : index
    %c0_17 = arith.constant 0 : index
    %22 = vector.load %arg7[%c0_16, %c0_17] : memref<8x1xf32, #tpu.memory_space<vmem>>, vector<8x1xf32>
    tpu.vector_store %arg7[%c0_16, %c0_17], %21 {strides = array<i32>} : memref<8x1xf32, #tpu.memory_space<vmem>>, vector<8x1xf32>,
    %c0_i32_18 = arith.constant 0 : i32
    %23 = arith.cmpi eq, %arg1, %c0_i32_18 : i32
    %24 = arith.extui %23 : i1 to i32
    %c0_i32_19 = arith.constant 0 : i32
    %25 = arith.cmpi ne, %24, %c0_i32_19 : i32
    scf.if %25 {
      %c0_20 = arith.constant 0 : index
      %c0_21 = arith.constant 0 : index
      %26 = vector.load %arg6[%c0_20, %c0_21] : memref<8x1xf32, #tpu.memory_space<vmem>>, vector<8x1xf32>
      %c0_22 = arith.constant 0 : index
      %c0_23 = arith.constant 0 : index
      %27 = vector.load %arg7[%c0_22, %c0_23] : memref<8x1xf32, #tpu.memory_space<vmem>>, vector<8x1xf32>
      %28 = arith.mulf %26, %27 : vector<8x1xf32>
      %cst_24 = arith.constant 1.000000e-16 : f32
      %29 = vector.broadcast %cst_24 : f32 to vector<8x1xf32>
      %30 = arith.maximumf %28, %29 : vector<8x1xf32>
      %31 = math.rsqrt %30 : vector<8x1xf32>
      %c0_25 = arith.constant 0 : index
      %c0_26 = arith.constant 0 : index
      %32 = vector.load %arg5[%c0_25, %c0_26] : memref<8x1xf32, #tpu.memory_space<vmem>>, vector<8x1xf32>
      %33 = arith.mulf %32, %31 : vector<8x1xf32>
      %34 = arith.mulf %33, %33 : vector<8x1xf32>
      %35 = vector.shape_cast %34 : vector<8x1xf32> to vector<1x8x1xf32>
      %cst_27 = arith.constant dense<0.000000e+00> : vector<1xf32>
      %36 = vector.multi_reduction <add>, %35, %cst_27 [1, 2] : vector<1x8x1xf32> to vector<1xf32>
      %37 = vector.shape_cast %36 : vector<1xf32> to vector<1x1x1xf32>
      %38 = vector.extract %37[0, 0, 0] : f32 from vector<1x1x1xf32>
      %cst_28 = arith.constant 3.05175781E-5 : f32
      %39 = arith.mulf %38, %cst_28 : f32
      %40 = vector.broadcast %39 : f32 to vector<8x128xf32>
      %c0_29 = arith.constant 0 : index
      %c0_30 = arith.constant 0 : index
      %41 = vector.load %arg4[%c0_29, %c0_30] : memref<8x128xf32, #tpu.memory_space<vmem>>, vector<8x128xf32>
      tpu.vector_store %arg4[%c0_29, %c0_30], %40 {strides = array<i32>} : memref<8x128xf32, #tpu.memory_space<vmem>>, vector<8x128xf32>,
    } else {
    }
    return
  }
  func.func @transform_0(%arg0: i32, %arg1: i32) -> (i32, i32) {
    %c0_i32 = arith.constant 0 : i32
    return %arg0, %arg1 : i32, i32
  }
  func.func @transform_1(%arg0: i32, %arg1: i32) -> (i32, i32) {
    %c0_i32 = arith.constant 0 : i32
    return %arg0, %arg1 : i32, i32
  }
  func.func @transform_2(%arg0: i32, %arg1: i32) -> (i32, i32) {
    %c0_i32 = arith.constant 0 : i32
    %c0_i32_0 = arith.constant 0 : i32
    return %arg0, %c0_i32 : i32, i32
  }
}

</mosaic_0001>

<llo_original>
// kernel: tpu_custom_call.1
$region0: #{tpu_custom_call.1}
  #allocation0 [shape = 'u32[]', space=smem, size = 0x4, offset = 0x4, fixed_abs, tag = 'smem constant byte address 0x4 - core index']
  #allocation1 [shape = 'u32[144,128]{1,0:T(1,128)}', space=vmem, size = 0x12000, scoped, tag = 'internal scratch']
  #allocation2 [shape = 'f32[8,1]{1,0:T(8,128)}', space=vmem, size = 0x1000, scoped, tag = 'scratch operand']
  #allocation3 [shape = 'f32[8,1]{1,0:T(8,128)}', space=vmem, size = 0x1000, scoped, tag = 'scratch operand']
  #allocation4 [shape = 'f32[8,1]{1,0:T(8,128)}', space=vmem, size = 0x1000, scoped, tag = 'scratch operand']
  %s0 = inlined_call_operand.hbm [shape: f32[8,32], index: 0, kind: input, shape index: {}]
  %s1 = inlined_call_operand.hbm [shape: f32[8,32], index: 1, kind: input, shape index: {}]
  %s2 = inlined_call_operand.hbm [shape: f32[8,128], index: 2, kind: output, shape index: {}]
  %s3 = sld [smem:[#allocation0]]
  $region34: #{tpu_custom_call.1} parent=0
    _
  %s5 = ssub.s32 1, %s3
  %s6 = scalar_select 0, %s5, %s3
  $region1: #{tpu_custom_call.1} parent=0
    #allocation5 [shape = 'u8[4096]{0}', space=vmem, size = 0x1000, scoped, tag = 'input window, operand 0, single buffered']
    #allocation6 [shape = 's32[1]{0}', space=sflag, size = 0x4, scoped, tag = 'scoped memory for tpu_custom_call.1']
    #allocation7 [shape = 's32[1]{0}', space=sflag, size = 0x4, scoped, tag = 'scoped memory for tpu_custom_call.1']
    #allocation8 [shape = 'u8[4096]{0}', space=vmem, size = 0x1000, scoped, tag = 'input window, operand 1, single buffered']
    #allocation9 [shape = 's32[1]{0}', space=sflag, size = 0x4, scoped, tag = 'scoped memory for tpu_custom_call.1']
    #allocation10 [shape = 'u8[4096]{0}', space=vmem, size = 0x1000, scoped, tag = 'output window, operand 0, single buffered']
    %7 = vsyncpa [#allocation6], 0
    %8 = vsyncpa [#allocation9], 0
    %9 = vsyncpa [#allocation7], 0
    // Predicated region
    $region2: #{tpu_custom_call.1} parent=1 // pred_check
      _
    $region3: #{tpu_custom_call.1} parent=1 // pred_check_branch
      %11 = sbr.rel (0) target = $region5
    $region4: #{tpu_custom_call.1} parent=1 // pred_region
      %s13 = ssub.s32 128, 128
      %14 = vsyncadd [#allocation6], %s13
      %s16 = sshll.u32 [#allocation5], 4
      %s17 = int_to_ptr.vmem [resolvable:$true] %s16
      %19 = dma.hbm_to_vmem [thread:$0]  %s0, 128, %s17, [#allocation6]
    $region5: #{tpu_custom_call.1} parent=1 // pred_fallthru
      _
    // Predicated region
    $region6: #{tpu_custom_call.1} parent=1 // pred_check
      _
    $region7: #{tpu_custom_call.1} parent=1 // pred_check_branch
      %21 = sbr.rel (0) target = $region9
    $region8: #{tpu_custom_call.1} parent=1 // pred_region
      %s23 = ssub.s32 128, 128
      %24 = vsyncadd [#allocation9], %s23
      %s26 = sshll.u32 [#allocation8], 4
      %s27 = int_to_ptr.vmem [resolvable:$true] %s26
      %29 = dma.hbm_to_vmem [thread:$0]  %s1, 128, %s27, [#allocation9]
    $region9: #{tpu_custom_call.1} parent=1 // pred_fallthru
      _
    // Predicated region
    $region10: #{tpu_custom_call.1} parent=1 // pred_check
      _
    $region11: #{tpu_custom_call.1} parent=1 // pred_check_branch
      %31 = sbr.rel (0) target = $region13
    $region12: #{tpu_custom_call.1} parent=1 // pred_region
      %32 = dma.done [#allocation6], 128
    $region13: #{tpu_custom_call.1} parent=1 // pred_fallthru
      _
    // Predicated region
    $region14: #{tpu_custom_call.1} parent=1 // pred_check
      _
    $region15: #{tpu_custom_call.1} parent=1 // pred_check_branch
      %34 = sbr.rel (0) target = $region17
    $region16: #{tpu_custom_call.1} parent=1 // pred_region
      %35 = dma.done [#allocation9], 128
    $region17: #{tpu_custom_call.1} parent=1 // pred_fallthru
      _
    %p36 = scmp.eq.s32.totalorder 0, 0
    // Predicated region
    $region18: #{tpu_custom_call.1} parent=1 // pred_check
      %p37 = pneg %p36
    $region19: #{tpu_custom_call.1} parent=1 // pred_check_branch
      %39 = sbr.rel (%p37) target = $region21
    $region20: #{tpu_custom_call.1} parent=1 // pred_region
      %vm40 = vcmask 7168
      %41 = vst.msk [vmem:[#allocation2] sm:$0xff] %vm40, 0.0
      %42 = vst.msk [vmem:[#allocation3] sm:$0xff] %vm40, 0.0
      %43 = vst.msk [vmem:[#allocation4] sm:$0xff] %vm40, 0.0
    $region21: #{tpu_custom_call.1} parent=1 // pred_fallthru
      _
    %v44 = vld [vmem:[#allocation5] sm:$0xff]
    %v45 = vld [vmem:[#allocation8] sm:$0xff]
    %v46 = vmul.f32 %v44, %v45
    %v47 = vmul.f32 %v44, %v44
    %v48 = vmul.f32 %v45, %v45
    %v49 = vld [vmem:[#allocation2] sm:$0xff]
    %vm50 = vcmask 261120
    %v51 = vsel %vm50, %v46, 0.0
    %52 = vadd.xlane.f32.xlu0 %v51
    %v53 = vpop.xlane.xlu0 %52
    %v54 = vadd.f32 %v49, %v53
    %vm55 = vcmask 7168
    %56 = vst.msk [vmem:[#allocation2] sm:$0xff] %vm55, %v54
    %v57 = vld [vmem:[#allocation3] sm:$0xff]
    %v58 = vsel %vm50, %v47, 0.0
    %59 = vadd.xlane.f32.xlu0 %v58
    %v60 = vpop.xlane.xlu0 %59
    %v61 = vadd.f32 %v57, %v60
    %62 = vst.msk [vmem:[#allocation3] sm:$0xff] %vm55, %v61
    %v63 = vld [vmem:[#allocation4] sm:$0xff]
    %v64 = vsel %vm50, %v48, 0.0
    %65 = vadd.xlane.f32.xlu0 %v64
    %v66 = vpop.xlane.xlu0 %65
    %v67 = vadd.f32 %v63, %v66
    %68 = vst.msk [vmem:[#allocation4] sm:$0xff] %vm55, %v67
    // Predicated region
    $region22: #{tpu_custom_call.1} parent=1 // pred_check
      %p69 = pneg %p36
    $region23: #{tpu_custom_call.1} parent=1 // pred_check_branch
      %71 = sbr.rel (%p69) target = $region25
    $region24: #{tpu_custom_call.1} parent=1 // pred_region
      %v72 = vld [vmem:[#allocation3] sm:$0xff]
      %v73 = vld [vmem:[#allocation4] sm:$0xff]
      %v74 = vmul.f32 %v72, %v73
      %v75 = vmax.f32 %v74, 1e-16
      %v76 = vrsqrt.pop %v75
      %v77 = vld [vmem:[#allocation2] sm:$0xff]
      %v78 = vmul.f32 %v77, %v76
      %v79 = vmul.f32 %v78, %v78
      %v80 = vsel %vm55, %v79, 0.0
      %81 = vadd.xlane.f32.xlu0 %v80
      %v82 = vpop.xlane.xlu0 %81
      %v83 = vrot.slane %v82, 4
      %v84 = vadd.f32 %v82, %v83
      %v85 = vrot.slane %v84, 2
      %v86 = vadd.f32 %v84, %v85
      %v87 = vrot.slane %v86, 1
      %v88 = vadd.f32 %v86, %v87
      %s89 = vtos %v88
      %s90 = smul.f32 %s89, 3.0517578e-05
      %v91 = vstv %s90
      %92 = vst [vmem:[#allocation10] sm:$0xff] %v91
    $region25: #{tpu_custom_call.1} parent=1 // pred_fallthru
      _
    // Predicated region
    $region26: #{tpu_custom_call.1} parent=1 // pred_check
      _
    $region27: #{tpu_custom_call.1} parent=1 // pred_check_branch
      %94 = sbr.rel (0) target = $region29
    $region28: #{tpu_custom_call.1} parent=1 // pred_region
      %s96 = ssub.s32 128, 128
      %97 = vsyncadd [#allocation7], %s96
      %s99 = sshll.u32 [#allocation10], 4
      %s100 = int_to_ptr.vmem [resolvable:$true] %s99
      %102 = dma.vmem_to_hbm [thread:$0]  %s100, 128, %s2, [#allocation7]
    $region29: #{tpu_custom_call.1} parent=1 // pred_fallthru
      _
    // Predicated region
    $region30: #{tpu_custom_call.1} parent=1 // pred_check
      _
    $region31: #{tpu_custom_call.1} parent=1 // pred_check_branch
      %104 = sbr.rel (0) target = $region33
    $region32: #{tpu_custom_call.1} parent=1 // pred_region
      %105 = dma.done [#allocation7], 128
    $region33: #{tpu_custom_call.1} parent=1 // pred_fallthru
      _
    %106 = vsyncpa [#allocation6], 1
    %107 = vsyncpa [#allocation9], 1
    %108 = vsyncpa [#allocation7], 1

</llo_original>
